<compile_context>
chip_gen: v7x
topology: tpu7x:2x2x1
jax: 0.10.0
libtpu: 0.0.40
codegen_flags: <defaults>
</compile_context>

<pallas_src>
import math
from functools import partial

import jax
import jax.numpy as jnp
from jax.experimental import pallas as pl
from jax.experimental.pallas import tpu as pltpu


_FUSED_VMEM_BUDGET = 20 * 1024 * 1024   # per-step working-set cap, fused path
_PASS_VMEM_BUDGET = 16 * 1024 * 1024    # per-step working-set cap, two-pass path
_VMEM_LIMIT = 32 * 1024 * 1024          # scoped VMEM limit (safe on v5e/v6e/v7x)


# ---------------------------------------------------------------------------
# Fused single-pass kernel:  out = relu( A_exp @ (X2 @ theta) )  per batch
# ---------------------------------------------------------------------------
def _gcn_fused_kernel(x_ref, th_ref, a_ref, o_ref):
    # x_ref : (1, NL, Cin)   th_ref : (Cin, TC)
    # a_ref : (NL, NL)       o_ref  : (1, NL, TC)
    w = jnp.dot(x_ref[0], th_ref[...], preferred_element_type=jnp.float32)
    y = jnp.dot(a_ref[...], w, preferred_element_type=jnp.float32)
    o_ref[0] = jnp.maximum(y, 0.0).astype(o_ref.dtype)


# ---------------------------------------------------------------------------
# Two-pass fallback kernels (large graphs), bf16 intermediate W
# ---------------------------------------------------------------------------
def _theta_matmul_kernel(x_ref, th_ref, w_ref):
    # x_ref : (TM, Cin)  th_ref : (Cin, Cout)  w_ref : (TM, Cout) bf16
    w_ref[...] = jnp.dot(
        x_ref[...], th_ref[...], preferred_element_type=jnp.float32
    ).astype(w_ref.dtype)


def _graph_matmul_relu_kernel(a_ref, w_ref, o_ref):
    # a_ref : (N, N) f32   w_ref : (1, N, TC2) bf16   o_ref : (1, N, TC2) f32
    w = w_ref[0].astype(jnp.float32)
    y = jnp.dot(a_ref[...], w, preferred_element_type=jnp.float32)
    o_ref[0] = jnp.maximum(y, 0.0).astype(o_ref.dtype)


def _aligned_cap(total, cap, align):
    """Full extent if it fits the cap, else the largest multiple of `align`
    <= cap.  Used with pl.cdiv grids, so it never silently exceeds the VMEM
    budget and never requires `total` to be divisible by the tile."""
    if total <= cap:
        return total
    return max(align, (cap // align) * align)


@partial(jax.jit, static_argnames=("force_two_pass",))
def gcn_forward(X, A_hat, theta, force_two_pass=False):
    """X: (B, N, L, Cin), A_hat: (N, N), theta: (Cin, Cout) -> (B, N, L, Cout)."""
    B, N, L, Cin = X.shape
    Cout = theta.shape[1]
    NL = N * L
    dtype = X.dtype

    # ---- fused-path column tile (budget aware; lane-aligned when tiled) ----
    per_col_bytes = 4 * (Cin + 3 * NL)              # theta col + out(x2) + W value
    tc_cap = max(128, _FUSED_VMEM_BUDGET // (2 * per_col_bytes))
    TC = _aligned_cap(Cout, tc_cap, 128)
    if B == 1 and TC == Cout and Cout % 256 == 0:
        TC = Cout // 2                               # >=2 steps for v7x's 2 TCs

    fused_bytes = 4 * (NL * NL + 2 * NL * Cin + Cin * TC + 3 * NL * TC)
    use_fused = (not force_two_pass) and NL <= 2048 and fused_bytes <= _FUSED_VMEM_BUDGET

    if use_fused:
        # (B,N,L,Cin) -> (B, N*L, Cin) is a free row-major reshape.
        X2 = X.reshape(B, NL, Cin)
        # Node mixing on the flattened (N*L) axis: A_exp = kron(A_hat, I_L).
        A_exp = jnp.kron(A_hat, jnp.eye(L, dtype=A_hat.dtype))  # (NL, NL)

        out = pl.pallas_call(
            _gcn_fused_kernel,
            out_shape=jax.ShapeDtypeStruct((B, NL, Cout), dtype),
            grid_spec=pltpu.PrefetchScalarGridSpec(
                num_scalar_prefetch=0,
                grid=(B, pl.cdiv(Cout, TC)),
                in_specs=[
                    pl.BlockSpec((1, NL, Cin), lambda b, c: (b, 0, 0)),
                    pl.BlockSpec((Cin, TC), lambda b, c: (0, c)),     # theta
                    pl.BlockSpec((NL, NL), lambda b, c: (0, 0)),      # A_exp resident
                ],
                out_specs=pl.BlockSpec((1, NL, TC), lambda b, c: (b, 0, c)),
            ),
            compiler_params=pltpu.CompilerParams(
                dimension_semantics=("parallel", "parallel"),
                vmem_limit_bytes=_VMEM_LIMIT,
            ),
        )(X2, theta, A_exp)
        return out.reshape(B, N, L, Cout)

    # --------------- two-pass fallback for large graphs --------------------
    # TODO(synk): for very large N, add a node-reduction ("arbitrary") grid
    # axis with an f32 accumulator + pl.when finalize instead of a resident
    # (N, N) A_hat block.
    M = B * N * L
    LC = L * Cout
    X2 = X.reshape(M, Cin)

    # Pass 1: W = X2 @ theta, stored bf16 (halves intermediate HBM traffic).
    tm_cap = max(8, _PASS_VMEM_BUDGET // (2 * (Cin * 4 + Cout * 2)))
    TM = _aligned_cap(M, tm_cap, 8)
    W = pl.pallas_call(
        _theta_matmul_kernel,
        out_shape=jax.ShapeDtypeStruct((M, Cout), jnp.bfloat16),
        grid_spec=pltpu.PrefetchScalarGridSpec(
            num_scalar_prefetch=0,
            grid=(pl.cdiv(M, TM),),
            in_specs=[
                pl.BlockSpec((TM, Cin), lambda i: (i, 0)),
                pl.BlockSpec((Cin, Cout), lambda i: (0, 0)),   # theta resident
            ],
            out_specs=pl.BlockSpec((TM, Cout), lambda i: (i, 0)),
        ),
        compiler_params=pltpu.CompilerParams(
            dimension_semantics=("parallel",),
            vmem_limit_bytes=_VMEM_LIMIT,
        ),
    )(X2, theta)

    # Pass 2: out = relu(A_hat @ W) on lane-dense (N, L*Cout) slabs.
    W3 = W.reshape(B, N, LC)                         # free row-major view
    tc2_cap = max(128, _PASS_VMEM_BUDGET // (2 * N * (2 + 4)))
    TC2 = _aligned_cap(LC, tc2_cap, 128)
    out = pl.pallas_call(
        _graph_matmul_relu_kernel,
        out_shape=jax.ShapeDtypeStruct((B, N, LC), dtype),
        grid_spec=pltpu.PrefetchScalarGridSpec(
            num_scalar_prefetch=0,
            grid=(B, pl.cdiv(LC, TC2)),
            in_specs=[
                pl.BlockSpec((N, N), lambda b, c: (0, 0)),        # A_hat resident
                pl.BlockSpec((1, N, TC2), lambda b, c: (b, 0, c)),
            ],
            out_specs=pl.BlockSpec((1, N, TC2), lambda b, c: (b, 0, c)),
        ),
        compiler_params=pltpu.CompilerParams(
            dimension_semantics=("parallel", "parallel"),
            vmem_limit_bytes=_VMEM_LIMIT,
        ),
    )(A_hat, W3)
    return out.reshape(B, N, L, Cout)


def gcn_reference(X, A_hat, theta):
    y = jnp.einsum("ij,kjlm->kilm", A_hat, X)
    return jax.nn.relu(jnp.einsum("kjlm,mn->kjln", y, theta))


if __name__ == "__main__":
    # Small shapes consistent with the module's forward.
    B, N, L = 2, 8, 16
    in_channels, out_channels = 32, 64

    key = jax.random.PRNGKey(0)
    kx, ka, kt = jax.random.split(key, 3)

    X = jax.random.normal(kx, (B, N, L, in_channels), dtype=jnp.float32)
    A_hat = jax.random.normal(ka, (N, N), dtype=jnp.float32)

    # theta ~ U(-stdv, stdv), stdv = 1/sqrt(out_channels)  (matches reset()).
    stdv = 1.0 / math.sqrt(out_channels)
    theta = jax.random.uniform(
        kt, (in_channels, out_channels), dtype=jnp.float32,
        minval=-stdv, maxval=stdv,
    )

    ref = gcn_reference(X, A_hat, theta)

    # Primary fused path (f32 end-to-end) -- tight tolerance.
    out = jax.block_until_ready(gcn_forward(X, A_hat, theta))
    assert out.shape == (B, N, L, out_channels)
    assert jnp.allclose(out, ref, atol=1e-4, rtol=1e-4)

    # Also exercise the large-graph two-pass fallback (bf16 intermediate W,
    # f32 accumulation) -- looser tolerance due to the bf16 intermediate.
    out2 = jax.block_until_ready(gcn_forward(X, A_hat, theta, force_two_pass=True))
    assert out2.shape == (B, N, L, out_channels)
    assert jnp.allclose(out2, ref, atol=5e-2, rtol=5e-2)

    print("KERNEL_OK")
</pallas_src>

<mosaic_0001>
module attributes {stable_mosaic.version = 11 : i64} {
  func.func @_gcn_fused_kernel(%arg0: i32, %arg1: i32, %arg2: memref<1x128x32xf32, #tpu.memory_space<vmem>>, %arg3: memref<32x64xf32, #tpu.memory_space<vmem>>, %arg4: memref<128x128xf32, #tpu.memory_space<vmem>>, %arg5: memref<1x128x64xf32, #tpu.memory_space<vmem>>) attributes {dimension_semantics = [#tpu.dimension_semantics<parallel>, #tpu.dimension_semantics<parallel>], iteration_bounds = array<i64: 2, 1>, scalar_prefetch = 0 : i64, scratch_operands = 0 : i64, tpu.core_type = #tpu.core_type<tc>, window_params = [{transform_indices = @transform_0, window_bounds = array<i64: 1, 128, 32>}, {transform_indices = @transform_1, window_bounds = array<i64: 32, 64>}, {pipeline_mode = #tpu.pipeline_mode<synchronous>, transform_indices = @transform_2, window_bounds = array<i64: 128, 128>}, {transform_indices = @transform_3, window_bounds = array<i64: 1, 128, 64>}]} {
    %c0 = arith.constant 0 : index
    %c0_0 = arith.constant 0 : index
    %c0_1 = arith.constant 0 : index
    %0 = vector.load %arg2[%c0, %c0_0, %c0_1] : memref<1x128x32xf32, #tpu.memory_space<vmem>>, vector<1x128x32xf32>
    %1 = vector.shape_cast %0 : vector<1x128x32xf32> to vector<128x32xf32>
    %c0_2 = arith.constant 0 : index
    %c0_3 = arith.constant 0 : index
    %2 = vector.load %arg3[%c0_2, %c0_3] : memref<32x64xf32, #tpu.memory_space<vmem>>, vector<32x64xf32>
    %cst = arith.constant dense<0.000000e+00> : vector<128x64xf32>
    %3 = tpu.matmul %1, %2, %cst {dimension_numbers = #tpu.dot_dimension_numbers<[1], [0], [0], [1], [0, 0, 1, 1], [], []>} : vector<128x32xf32>, vector<32x64xf32>, vector<128x64xf32> -> vector<128x64xf32>
    %c0_4 = arith.constant 0 : index
    %c0_5 = arith.constant 0 : index
    %4 = vector.load %arg4[%c0_4, %c0_5] : memref<128x128xf32, #tpu.memory_space<vmem>>, vector<128x128xf32>
    %cst_6 = arith.constant dense<0.000000e+00> : vector<128x64xf32>
    %5 = tpu.matmul %4, %3, %cst_6 {dimension_numbers = #tpu.dot_dimension_numbers<[1], [0], [0], [1], [0, 0, 1, 1], [], []>} : vector<128x128xf32>, vector<128x64xf32>, vector<128x64xf32> -> vector<128x64xf32>
    %cst_7 = arith.constant 0.000000e+00 : f32
    %6 = vector.broadcast %cst_7 : f32 to vector<128x64xf32>
    %7 = arith.maximumf %5, %6 : vector<128x64xf32>
    %c0_8 = arith.constant 0 : index
    %c0_9 = arith.constant 0 : index
    %c0_10 = arith.constant 0 : index
    %8 = vector.load %arg5[%c0_8, %c0_9, %c0_10] : memref<1x128x64xf32, #tpu.memory_space<vmem>>, vector<1x128x64xf32>
    %9 = vector.shape_cast %8 : vector<1x128x64xf32> to vector<128x64xf32>
    %10 = vector.shape_cast %7 : vector<128x64xf32> to vector<1x128x64xf32>
    tpu.vector_store %arg5[%c0_8, %c0_9, %c0_10], %10 {strides = array<i32>} : memref<1x128x64xf32, #tpu.memory_space<vmem>>, vector<1x128x64xf32>,
    return
  }
  func.func @transform_0(%arg0: i32, %arg1: i32) -> (i32, i32, i32) {
    %c0_i32 = arith.constant 0 : i32
    %c0_i32_0 = arith.constant 0 : i32
    %c0_i32_1 = arith.constant 0 : i32
    return %arg0, %c0_i32, %c0_i32_0 : i32, i32, i32
  }
  func.func @transform_1(%arg0: i32, %arg1: i32) -> (i32, i32) {
    %c0_i32 = arith.constant 0 : i32
    %c0_i32_0 = arith.constant 0 : i32
    return %c0_i32, %arg1 : i32, i32
  }
  func.func @transform_2(%arg0: i32, %arg1: i32) -> (i32, i32) {
    %c0_i32 = arith.constant 0 : i32
    %c0_i32_0 = arith.constant 0 : i32
    %c0_i32_1 = arith.constant 0 : i32
    return %c0_i32, %c0_i32_0 : i32, i32
  }
  func.func @transform_3(%arg0: i32, %arg1: i32) -> (i32, i32, i32) {
    %c0_i32 = arith.constant 0 : i32
    %c0_i32_0 = arith.constant 0 : i32
    return %arg0, %c0_i32, %arg1 : i32, i32, i32
  }
}

</mosaic_0001>

<llo_original>
// kernel: gcn_forward.1
$region0: #{gcn_forward.1}
  #allocation0 [shape = 'u32[]', space=smem, size = 0x4, offset = 0x4, fixed_abs, tag = 'smem constant byte address 0x4 - core index']
  #allocation1 [shape = 'u32[144,128]{1,0:T(1,128)}', space=vmem, size = 0x12000, scoped, tag = 'internal scratch']
  %s0 = inlined_call_operand.vmem [shape: f32[2,128,32], index: 0, kind: input, shape index: {}]
  %s1 = inlined_call_operand.vmem [shape: f32[32,64], index: 1, kind: input, shape index: {}]
  %s2 = inlined_call_operand.vmem [shape: f32[128,128], index: 2, kind: input, shape index: {}]
  %s3 = inlined_call_operand.hbm [shape: f32[2,128,64], index: 3, kind: output, shape index: {}]
  %s4 = sld [smem:[#allocation0]]
  $region45: #{gcn_forward.1} parent=0
    _
  %s6 = ssub.s32 1, %s4
  %s7 = scalar_select 0, %s6, %s4
  $region1: #{gcn_forward.1} parent=0
    #allocation2 [shape = 'u8[131072]{0}', space=vmem, size = 0x20000, scoped, tag = 'output window, operand 0']
    #allocation3 [shape = 's32[2]{0}', space=sflag, size = 0x8, scoped, tag = 'scoped memory for gcn_forward.1']
    %8 = vsyncpa [#allocation3], 0
    %s9 = scalar_lea.sflag [#allocation3], 1
    %10 = vsyncpa %s9, 0
    loop: start=0, step=1, limit=4
    $region2: #{gcn_forward.1} parent=1 // loop_pre_header
      _
    $region3: #{gcn_forward.1} parent=1 // loop_header
      %s12 = sphi 0, %s16
      %p13 = scmp.ge.s32.totalorder %s12, 4
      %s19 = sphi 0, %s31
      %s20 = sphi 0, %s27
      %s21 = sphi 0, %s19
      %s22 = sphi 0, %s20
      %s23 = sphi 0, %s21
      %s24 = sphi 0, %s22
      %s34 = sphi 0, %s36
      %s37 = sphi 0, %s34
      %s38 = sphi 0, %s37
      %s54 = sphi 0, %s38
      %s60 = sphi 0, %s62
      %s63 = sphi 0, %s60
      %s64 = sphi 0, %s63
      %s80 = sphi 0, %s64
      %s84 = sphi 0, %s84
      %s86 = sphi 0, %s84
      %s87 = sphi 0, %s86
      %s101 = sphi 0, %s87
      %s109 = sphi 0, %s111
      %s112 = sphi 0, %s109
      %s113 = sphi 0, %s112
      %s129 = sphi 0, %s113
    $region4: #{gcn_forward.1} parent=1 // loop_header_branch
      %15 = sbr.rel (%p13) target = $region8
    $region5: #{gcn_forward.1} parent=1 // loop_body
      %s17 = ssub.s32 %s12, 1
      %s18 = ssub.s32 %s12, 2
      %s25 = sadd.s32 1, %s20
      %p26 = scmp.ge.s32.totalorder %s25, 1
      %s27 = scalar_select %p26, 0, %s25
      %s28 = sadd.s32 1, %s19
      %s29 = scalar_select %p26, %s28, %s19
      %p30 = scmp.ge.s32.totalorder %s29, 2
      %s31 = scalar_select %p30, 0, %s29
      %s32 = ssub.s32 %s19, %s31
      %p33 = scmp.eq.s32.totalorder %s32, 0
      %s35 = sadd.s32 %s34, 1
      %s36 = scalar_select %p33, %s34, %s35
      %p39 = pneg %p33
      %p40 = scmp.eq.s32.totalorder %s12, 1
      %p41 = por %p39, %p40
      %p42 = scmp.ne.s32.totalorder %s34, %s37
      %p43 = scmp.eq.s32.totalorder %s12, 0
      %p44 = por %p42, %p43
      %p45 = scmp.ne.s32.totalorder %s34, %s37
      %p46 = scmp.eq.s32.totalorder %s17, 1
      %p47 = por %p45, %p46
      %p48 = scmp.ne.s32.totalorder %s37, %s38
      %p49 = scmp.eq.s32.totalorder %s17, 0
      %p50 = por %p48, %p49
      %p51 = scmp.ne.s32.totalorder %s37, %s38
      %p52 = scmp.eq.s32.totalorder %s18, 1
      %p53 = por %p51, %p52
      %p55 = scmp.ne.s32.totalorder %s38, %s54
      %p56 = scmp.eq.s32.totalorder %s18, 0
      %p57 = por %p55, %p56
      %s58 = ssub.s32 %s20, %s27
      %p59 = scmp.eq.s32.totalorder %s58, 0
      %s61 = sadd.s32 %s60, 1
      %s62 = scalar_select %p59, %s60, %s61
      %p65 = pneg %p59
      %p66 = scmp.eq.s32.totalorder %s12, 1
      %p67 = por %p65, %p66
      %p68 = scmp.ne.s32.totalorder %s60, %s63
      %p69 = scmp.eq.s32.totalorder %s12, 0
      %p70 = por %p68, %p69
      %p71 = scmp.ne.s32.totalorder %s60, %s63
      %p72 = scmp.eq.s32.totalorder %s17, 1
      %p73 = por %p71, %p72
      %p74 = scmp.ne.s32.totalorder %s63, %s64
      %p75 = scmp.eq.s32.totalorder %s17, 0
      %p76 = por %p74, %p75
      %p77 = scmp.ne.s32.totalorder %s63, %s64
      %p78 = scmp.eq.s32.totalorder %s18, 1
      %p79 = por %p77, %p78
      %p81 = scmp.ne.s32.totalorder %s64, %s80
      %p82 = scmp.eq.s32.totalorder %s18, 0
      %p83 = por %p81, %p82
      %s85 = sadd.s32 %s84, 1
      %p88 = scmp.eq.s32.totalorder %s12, 1
      %p89 = scmp.ne.s32.totalorder %s84, %s86
      %p90 = scmp.eq.s32.totalorder %s12, 0
      %p91 = por %p89, %p90
      %p92 = scmp.ne.s32.totalorder %s84, %s86
      %p93 = scmp.eq.s32.totalorder %s17, 1
      %p94 = por %p92, %p93
      %p95 = scmp.ne.s32.totalorder %s86, %s87
      %p96 = scmp.eq.s32.totalorder %s17, 0
      %p97 = por %p95, %p96
      %p98 = scmp.ne.s32.totalorder %s86, %s87
      %p99 = scmp.eq.s32.totalorder %s18, 1
      %p100 = por %p98, %p99
      %p102 = scmp.ne.s32.totalorder %s87, %s101
      %p103 = scmp.eq.s32.totalorder %s18, 0
      %p104 = por %p102, %p103
      %s105 = ssub.s32 %s19, %s31
      %s106 = ssub.s32 %s20, %s27
      %s107 = sor.u32 %s105, %s106
      %p108 = scmp.eq.s32.totalorder %s107, 0
      %s110 = sadd.s32 %s109, 1
      %s111 = scalar_select %p108, %s109, %s110
      %p114 = pneg %p108
      %p115 = scmp.eq.s32.totalorder %s12, 1
      %p116 = por %p114, %p115
      %p117 = scmp.ne.s32.totalorder %s109, %s112
      %p118 = scmp.eq.s32.totalorder %s12, 0
      %p119 = por %p117, %p118
      %p120 = scmp.ne.s32.totalorder %s109, %s112
      %p121 = scmp.eq.s32.totalorder %s17, 1
      %p122 = por %p120, %p121
      %p123 = scmp.ne.s32.totalorder %s112, %s113
      %p124 = scmp.eq.s32.totalorder %s17, 0
      %p125 = por %p123, %p124
      %p126 = scmp.ne.s32.totalorder %s112, %s113
      %p127 = scmp.eq.s32.totalorder %s18, 1
      %p128 = por %p126, %p127
      %p130 = scmp.ne.s32.totalorder %s113, %s129
      %p131 = scmp.eq.s32.totalorder %s18, 0
      %p132 = por %p130, %p131
      %p133 = scmp.le.s32.totalorder 1, %s12
      %p134 = scmp.lt.s32.totalorder %s12, 3
      %p135 = pnand %p133, %p134
      %p136 = pneg %p135
      // Predicated region
      $region9: #{gcn_forward.1} parent=5 // pred_check
        _
      $region10: #{gcn_forward.1} parent=5 // pred_check_branch
        %138 = sbr.rel (%p135) target = $region12
      $region11: #{gcn_forward.1} parent=5 // pred_region
        %s139 = ssub.s32 %s12, 1
        // Predicated region
        $region13: #{gcn_forward.1} parent=11 // pred_check
          %p140 = pneg %p76
        $region14: #{gcn_forward.1} parent=11 // pred_check_branch
          %142 = sbr.rel (%p140) target = $region16
        $region15: #{gcn_forward.1} parent=11 // pred_region
          %p143 = scmp.lt.s32.totalorder %s22, 0
          %s144 = scalar_select %p143, %s22, 0
          %s145 = smul.addr %s144, 8
          %s146 = scalar_lea.vmem %s1, %s145
        $region16: #{gcn_forward.1} parent=11 // pred_fallthru
          _
        // Predicated region
        $region17: #{gcn_forward.1} parent=11 // pred_check
          %p147 = pneg %p97
        $region18: #{gcn_forward.1} parent=11 // pred_check_branch
          %149 = sbr.rel (%p147) target = $region20
        $region19: #{gcn_forward.1} parent=11 // pred_region
          _
        $region20: #{gcn_forward.1} parent=11 // pred_fallthru
          _
      $region12: #{gcn_forward.1} parent=5 // pred_fallthru
        _
      %p150 = scmp.lt.s32.totalorder %s12, 2
      // Predicated region
      $region21: #{gcn_forward.1} parent=5 // pred_check
        %p151 = pneg %p150
      $region22: #{gcn_forward.1} parent=5 // pred_check_branch
        %153 = sbr.rel (%p151) target = $region24
      $region23: #{gcn_forward.1} parent=5 // pred_region
        // Predicated region
        $region25: #{gcn_forward.1} parent=23 // pred_check
          %p154 = pneg %p44
        $region26: #{gcn_forward.1} parent=23 // pred_check_branch
          %156 = sbr.rel (%p154) target = $region28
        $region27: #{gcn_forward.1} parent=23 // pred_region
          %p157 = scmp.lt.s32.totalorder %s19, 1
          %s158 = scalar_select %p157, %s19, 1
          %s159 = smul.addr %s158, 16
          %s160 = smul.addr %s159, 8
          %s161 = scalar_lea.vmem %s0, %s160
        $region28: #{gcn_forward.1} parent=23 // pred_fallthru
          _
      $region24: #{gcn_forward.1} parent=5 // pred_fallthru
        _
      %p162 = scmp.le.s32.totalorder 1, %s12
      %p163 = scmp.lt.s32.totalorder %s12, 3
      %p164 = pnand %p162, %p163
      %p165 = pneg %p164
      // Predicated region
      $region29: #{gcn_forward.1} parent=5 // pred_check
        _
      $region30: #{gcn_forward.1} parent=5 // pred_check_branch
        %167 = sbr.rel (%p164) target = $region32
      $region31: #{gcn_forward.1} parent=5 // pred_region
        %s168 = ssub.s32 %s12, 1
        %p169 = scmp.lt.s32.totalorder %s21, 1
        %s170 = scalar_select %p169, %s21, 1
        %s171 = smul.addr %s170, 16
        %s172 = smul.addr %s171, 8
        %s173 = scalar_lea.vmem %s0, %s172
        %p174 = pneg %p50
        %p175 = pneg %p47
        %p176 = scmp.lt.s32.totalorder %s22, 0
        %s177 = scalar_select %p176, %s22, 0
        %s178 = smul.addr %s177, 8
        %s179 = scalar_lea.vmem %s1, %s178
        %p180 = pneg %p76
        %p181 = pneg %p73
        %p182 = pneg %p97
        %p183 = pneg %p94
        %p184 = pneg %p125
        %p185 = pneg %p122
        %s186 = sand.u32 %s112, 1
        %s187 = scalar_lea.sflag [#allocation3], %s186
        %s188 = sand.u32 %s112, 1
        %s189 = smul.addr %s188, 128
        %s190 = scalar_lea.vmem [#allocation2], %s189
        %p191 = scmp.lt.s32.totalorder %s21, 1
        %s192 = scalar_select %p191, %s21, 1
        %s193 = smul.addr %s192, 16
        %s194 = smul.addr %s193, 8
        %s195 = scalar_lea.vmem %s0, %s194
        %p196 = scmp.lt.s32.totalorder %s22, 0
        %s197 = scalar_select %p196, %s22, 0
        %s198 = smul.addr %s197, 8
        %s199 = scalar_lea.vmem %s1, %s198
        %v200 = vld [vmem:[%s195] sm:$0xff]
        %v201 = vld [vmem:[%s195 + $0x8] sm:$0xff]
        %v202 = vld [vmem:[%s195 + $0x10] sm:$0xff]
        %v203 = vld [vmem:[%s195 + $0x18] sm:$0xff]
        %v204 = vld [vmem:[%s195 + $0x20] sm:$0xff]
        %v205 = vld [vmem:[%s195 + $0x28] sm:$0xff]
        %v206 = vld [vmem:[%s195 + $0x30] sm:$0xff]
        %v207 = vld [vmem:[%s195 + $0x38] sm:$0xff]
        %v208 = vld [vmem:[%s195 + $0x40] sm:$0xff]
        %v209 = vld [vmem:[%s195 + $0x48] sm:$0xff]
        %v210 = vld [vmem:[%s195 + $0x50] sm:$0xff]
        %v211 = vld [vmem:[%s195 + $0x58] sm:$0xff]
        %v212 = vld [vmem:[%s195 + $0x60] sm:$0xff]
        %v213 = vld [vmem:[%s195 + $0x68] sm:$0xff]
        %v214 = vld [vmem:[%s195 + $0x70] sm:$0xff]
        %v215 = vld [vmem:[%s195 + $0x78] sm:$0xff]
        %v216 = vld [vmem:[%s199] sm:$0xff]
        %v217 = vld [vmem:[%s199 + $0x8] sm:$0xff]
        %v218 = vld [vmem:[%s199 + $0x10] sm:$0xff]
        %v219 = vld [vmem:[%s199 + $0x18] sm:$0xff]
        %vm220 = vcmask 261120
        %v222 = vsel %vm220, %v200, 0
        %v225 = vsel %vm220, %v201, 0
        %v228 = vsel %vm220, %v202, 0
        %v231 = vsel %vm220, %v203, 0
        %v234 = vsel %vm220, %v204, 0
        %v237 = vsel %vm220, %v205, 0
        %v240 = vsel %vm220, %v206, 0
        %v243 = vsel %vm220, %v207, 0
        %v246 = vsel %vm220, %v208, 0
        %v249 = vsel %vm220, %v209, 0
        %v252 = vsel %vm220, %v210, 0
        %v255 = vsel %vm220, %v211, 0
        %v258 = vsel %vm220, %v212, 0
        %v261 = vsel %vm220, %v213, 0
        %v264 = vsel %vm220, %v214, 0
        %v267 = vsel %vm220, %v215, 0
        %269 = vmatprep.subr.mxu0 0.0
        %270 = vmatpush1.msra.mxu0 %v216
        %271 = vmatprep.subr.mxu0 0.0
        %272 = vmatpush1.msra.mxu0 %v217
        %273 = vmatprep.subr.mxu0 0.0
        %274 = vmatpush1.msra.mxu0 %v218
        %275 = vmatprep.subr.mxu0 0.0
        %276 = vmatpush1.msra.mxu0 %v219
        %277 = vmatprep.subr.mxu0 0.0
        %278 = vmatpush1.msra.mxu0 0.0
        %279 = vmatprep.subr.mxu0 0.0
        %280 = vmatpush1.msra.mxu0 0.0
        %281 = vmatprep.subr.mxu0 0.0
        %282 = vmatpush1.msra.mxu0 0.0
        %283 = vmatprep.subr.mxu0 0.0
        %284 = vmatpush1.msra.mxu0 0.0
        %285 = vmatprep.subr.mxu0 0.0
        %286 = vmatpush1.msra.mxu0 0.0
        %287 = vmatprep.subr.mxu0 0.0
        %288 = vmatpush1.msra.mxu0 0.0
        %289 = vmatprep.subr.mxu0 0.0
        %290 = vmatpush1.msra.mxu0 0.0
        %291 = vmatprep.subr.mxu0 0.0
        %292 = vmatpush1.msra.mxu0 0.0
        %293 = vmatprep.subr.mxu0 0.0
        %294 = vmatpush1.msra.mxu0 0.0
        %295 = vmatprep.subr.mxu0 0.0
        %296 = vmatpush1.msra.mxu0 0.0
        %297 = vmatprep.subr.mxu0 0.0
        %298 = vmatpush1.msra.mxu0 0.0
        %299 = vmatprep.subr.mxu0 0.0
        %300 = vmatpush1.msra.mxu0 0.0
        %301 = vmatprep.subr.mxu0 0.0
        %302 = vmatpush1.msra.mxu0 0.0
        %303 = vmatprep.subr.mxu0 0.0
        %304 = vmatpush1.msra.mxu0 0.0
        %305 = vmatprep.subr.mxu0 0.0
        %306 = vmatpush1.msra.mxu0 0.0
        %307 = vmatprep.subr.mxu0 0.0
        %308 = vmatpush1.msra.mxu0 0.0
        %309 = vmatprep.subr.mxu0 0.0
        %310 = vmatpush1.msra.mxu0 0.0
        %311 = vmatprep.subr.mxu0 0.0
        %312 = vmatpush1.msra.mxu0 0.0
        %313 = vmatprep.subr.mxu0 0.0
        %314 = vmatpush1.msra.mxu0 0.0
        %315 = vmatprep.subr.mxu0 0.0
        %316 = vmatpush1.msra.mxu0 0.0
        %317 = vmatprep.subr.mxu0 0.0
        %318 = vmatpush1.msra.mxu0 0.0
        %319 = vmatprep.subr.mxu0 0.0
        %320 = vmatpush1.msra.mxu0 0.0
        %321 = vmatprep.subr.mxu0 0.0
        %322 = vmatpush1.msra.mxu0 0.0
        %323 = vmatprep.subr.mxu0 0.0
        %324 = vmatpush1.msra.mxu0 0.0
        %325 = vmatprep.subr.mxu0 0.0
        %326 = vmatpush1.msra.mxu0 0.0
        %327 = vmatprep.subr.mxu0 0.0
        %328 = vmatpush1.msra.mxu0 0.0
        %329 = vmatprep.subr.mxu0 0.0
        %330 = vmatpush1.msra.mxu0 0.0
        %331 = vmatprep.subr.mxu0 0.0
        %332 = vmatpush1.msra.mxu0 0.0
        %333 = vmatprep.mubr.f32.mxu0 0.0
        %334 = vmatmul.mubr.f32.gmra.mrb[0].mxu0 %v222
        %v335 = vpop.f32.mrb[0].mxu0
        %v336 = vadd.f32 0.0, %v335
        %v337 = vpop.f32.mrb[0].mxu0
        %338 = vmatprep.mubr.f32.mxu0 0.0
        %339 = vmatmul.mubr.f32.gmra.mrb[0].mxu0 %v225
        %v340 = vpop.f32.mrb[0].mxu0
        %v341 = vadd.f32 0.0, %v340
        %v342 = vpop.f32.mrb[0].mxu0
        %343 = vmatprep.mubr.f32.mxu0 0.0
        %344 = vmatmul.mubr.f32.gmra.mrb[0].mxu0 %v228
        %v345 = vpop.f32.mrb[0].mxu0
        %v346 = vadd.f32 0.0, %v345
        %v347 = vpop.f32.mrb[0].mxu0
        %348 = vmatprep.mubr.f32.mxu0 0.0
        %349 = vmatmul.mubr.f32.gmra.mrb[0].mxu0 %v231
        %v350 = vpop.f32.mrb[0].mxu0
        %v351 = vadd.f32 0.0, %v350
        %v352 = vpop.f32.mrb[0].mxu0
        %353 = vmatprep.mubr.f32.mxu0 0.0
        %354 = vmatmul.mubr.f32.gmra.mrb[0].mxu0 %v234
        %v355 = vpop.f32.mrb[0].mxu0
        %v356 = vadd.f32 0.0, %v355
        %v357 = vpop.f32.mrb[0].mxu0
        %358 = vmatprep.mubr.f32.mxu0 0.0
        %359 = vmatmul.mubr.f32.gmra.mrb[0].mxu0 %v237
        %v360 = vpop.f32.mrb[0].mxu0
        %v361 = vadd.f32 0.0, %v360
        %v362 = vpop.f32.mrb[0].mxu0
        %363 = vmatprep.mubr.f32.mxu0 0.0
        %364 = vmatmul.mubr.f32.gmra.mrb[0].mxu0 %v240
        %v365 = vpop.f32.mrb[0].mxu0
        %v366 = vadd.f32 0.0, %v365
        %v367 = vpop.f32.mrb[0].mxu0
        %368 = vmatprep.mubr.f32.mxu0 0.0
        %369 = vmatmul.mubr.f32.gmra.mrb[0].mxu0 %v243
        %v370 = vpop.f32.mrb[0].mxu0
        %v371 = vadd.f32 0.0, %v370
        %v372 = vpop.f32.mrb[0].mxu0
        %373 = vmatprep.mubr.f32.mxu0 0.0
        %374 = vmatmul.mubr.f32.gmra.mrb[0].mxu0 %v246
        %v375 = vpop.f32.mrb[0].mxu0
        %v376 = vadd.f32 0.0, %v375
        %v377 = vpop.f32.mrb[0].mxu0
        %378 = vmatprep.mubr.f32.mxu0 0.0
        %379 = vmatmul.mubr.f32.gmra.mrb[0].mxu0 %v249
        %v380 = vpop.f32.mrb[0].mxu0
        %v381 = vadd.f32 0.0, %v380
        %v382 = vpop.f32.mrb[0].mxu0
        %383 = vmatprep.mubr.f32.mxu0 0.0
        %384 = vmatmul.mubr.f32.gmra.mrb[0].mxu0 %v252
        %v385 = vpop.f32.mrb[0].mxu0
        %v386 = vadd.f32 0.0, %v385
        %v387 = vpop.f32.mrb[0].mxu0
        %388 = vmatprep.mubr.f32.mxu0 0.0
        %389 = vmatmul.mubr.f32.gmra.mrb[0].mxu0 %v255
        %v390 = vpop.f32.mrb[0].mxu0
        %v391 = vadd.f32 0.0, %v390
        %v392 = vpop.f32.mrb[0].mxu0
        %393 = vmatprep.mubr.f32.mxu0 0.0
        %394 = vmatmul.mubr.f32.gmra.mrb[0].mxu0 %v258
        %v395 = vpop.f32.mrb[0].mxu0
        %v396 = vadd.f32 0.0, %v395
        %v397 = vpop.f32.mrb[0].mxu0
        %398 = vmatprep.mubr.f32.mxu0 0.0
        %399 = vmatmul.mubr.f32.gmra.mrb[0].mxu0 %v261
        %v400 = vpop.f32.mrb[0].mxu0
        %v401 = vadd.f32 0.0, %v400
        %v402 = vpop.f32.mrb[0].mxu0
        %403 = vmatprep.mubr.f32.mxu0 0.0
        %404 = vmatmul.mubr.f32.gmra.mrb[0].mxu0 %v264
        %v405 = vpop.f32.mrb[0].mxu0
        %v406 = vadd.f32 0.0, %v405
        %v407 = vpop.f32.mrb[0].mxu0
        %408 = vmatprep.mubr.f32.mxu0 0.0
        %409 = vmatmul.mubr.f32.gmra.mrb[0].mxu0 %v267
        %v410 = vpop.f32.mrb[0].mxu0
        %v411 = vadd.f32 0.0, %v410
        %v412 = vpop.f32.mrb[0].mxu0
        %413 = vdwg.mxu0
        %v414 = vld [vmem:[%s2] sm:$0xff]
        %v415 = vld [vmem:[%s2 + $0x8] sm:$0xff]
        %v416 = vld [vmem:[%s2 + $0x10] sm:$0xff]
        %v417 = vld [vmem:[%s2 + $0x18] sm:$0xff]
        %v418 = vld [vmem:[%s2 + $0x20] sm:$0xff]
        %v419 = vld [vmem:[%s2 + $0x28] sm:$0xff]
        %v420 = vld [vmem:[%s2 + $0x30] sm:$0xff]
        %v421 = vld [vmem:[%s2 + $0x38] sm:$0xff]
        %v422 = vld [vmem:[%s2 + $0x40] sm:$0xff]
        %v423 = vld [vmem:[%s2 + $0x48] sm:$0xff]
        %v424 = vld [vmem:[%s2 + $0x50] sm:$0xff]
        %v425 = vld [vmem:[%s2 + $0x58] sm:$0xff]
        %v426 = vld [vmem:[%s2 + $0x60] sm:$0xff]
        %v427 = vld [vmem:[%s2 + $0x68] sm:$0xff]
        %v428 = vld [vmem:[%s2 + $0x70] sm:$0xff]
        %v429 = vld [vmem:[%s2 + $0x78] sm:$0xff]
        %430 = vmatprep.subr.mxu0 0.0
        %431 = vmatpush1.msra.mxu0 %v336
        %432 = vmatprep.subr.mxu0 0.0
        %433 = vmatpush1.msra.mxu0 %v341
        %434 = vmatprep.subr.mxu0 0.0
        %435 = vmatpush1.msra.mxu0 %v346
        %436 = vmatprep.subr.mxu0 0.0
        %437 = vmatpush1.msra.mxu0 %v351
        %438 = vmatprep.subr.mxu0 0.0
        %439 = vmatpush1.msra.mxu0 %v356
        %440 = vmatprep.subr.mxu0 0.0
        %441 = vmatpush1.msra.mxu0 %v361
        %442 = vmatprep.subr.mxu0 0.0
        %443 = vmatpush1.msra.mxu0 %v366
        %444 = vmatprep.subr.mxu0 0.0
        %445 = vmatpush1.msra.mxu0 %v371
        %446 = vmatprep.subr.mxu0 0.0
        %447 = vmatpush1.msra.mxu0 %v376
        %448 = vmatprep.subr.mxu0 0.0
        %449 = vmatpush1.msra.mxu0 %v381
        %450 = vmatprep.subr.mxu0 0.0
        %451 = vmatpush1.msra.mxu0 %v386
        %452 = vmatprep.subr.mxu0 0.0
        %453 = vmatpush1.msra.mxu0 %v391
        %454 = vmatprep.subr.mxu0 0.0
        %455 = vmatpush1.msra.mxu0 %v396
        %456 = vmatprep.subr.mxu0 0.0
        %457 = vmatpush1.msra.mxu0 %v401
        %458 = vmatprep.subr.mxu0 0.0
        %459 = vmatpush1.msra.mxu0 %v406
        %460 = vmatprep.subr.mxu0 0.0
        %461 = vmatpush1.msra.mxu0 %v411
        %462 = vmatprep.subr.mxu0 0.0
        %463 = vmatpush1.msra.mxu0 0.0
        %464 = vmatprep.subr.mxu0 0.0
        %465 = vmatpush1.msra.mxu0 0.0
        %466 = vmatprep.subr.mxu0 0.0
        %467 = vmatpush1.msra.mxu0 0.0
        %468 = vmatprep.subr.mxu0 0.0
        %469 = vmatpush1.msra.mxu0 0.0
        %470 = vmatprep.subr.mxu0 0.0
        %471 = vmatpush1.msra.mxu0 0.0
        %472 = vmatprep.subr.mxu0 0.0
        %473 = vmatpush1.msra.mxu0 0.0
        %474 = vmatprep.subr.mxu0 0.0
        %475 = vmatpush1.msra.mxu0 0.0
        %476 = vmatprep.subr.mxu0 0.0
        %477 = vmatpush1.msra.mxu0 0.0
        %478 = vmatprep.subr.mxu0 0.0
        %479 = vmatpush1.msra.mxu0 0.0
        %480 = vmatprep.subr.mxu0 0.0
        %481 = vmatpush1.msra.mxu0 0.0
        %482 = vmatprep.subr.mxu0 0.0
        %483 = vmatpush1.msra.mxu0 0.0
        %484 = vmatprep.subr.mxu0 0.0
        %485 = vmatpush1.msra.mxu0 0.0
        %486 = vmatprep.subr.mxu0 0.0
        %487 = vmatpush1.msra.mxu0 0.0
        %488 = vmatprep.subr.mxu0 0.0
        %489 = vmatpush1.msra.mxu0 0.0
        %490 = vmatprep.subr.mxu0 0.0
        %491 = vmatpush1.msra.mxu0 0.0
        %492 = vmatprep.subr.mxu0 0.0
        %493 = vmatpush1.msra.mxu0 0.0
        %494 = vmatprep.mubr.f32.mxu0 0.0
        %495 = vmatmul.mubr.f32.gmra.mrb[0].mxu0 %v414
        %v496 = vpop.f32.mrb[0].mxu0
        %v497 = vadd.f32 0.0, %v496
        %v498 = vpop.f32.mrb[0].mxu0
        %499 = vmatprep.mubr.f32.mxu0 0.0
        %500 = vmatmul.mubr.f32.gmra.mrb[0].mxu0 %v415
        %v501 = vpop.f32.mrb[0].mxu0
        %v502 = vadd.f32 0.0, %v501
        %v503 = vpop.f32.mrb[0].mxu0
        %504 = vmatprep.mubr.f32.mxu0 0.0
        %505 = vmatmul.mubr.f32.gmra.mrb[0].mxu0 %v416
        %v506 = vpop.f32.mrb[0].mxu0
        %v507 = vadd.f32 0.0, %v506
        %v508 = vpop.f32.mrb[0].mxu0
        %509 = vmatprep.mubr.f32.mxu0 0.0
        %510 = vmatmul.mubr.f32.gmra.mrb[0].mxu0 %v417
        %v511 = vpop.f32.mrb[0].mxu0
        %v512 = vadd.f32 0.0, %v511
        %v513 = vpop.f32.mrb[0].mxu0
        %514 = vmatprep.mubr.f32.mxu0 0.0
        %515 = vmatmul.mubr.f32.gmra.mrb[0].mxu0 %v418
        %v516 = vpop.f32.mrb[0].mxu0
        %v517 = vadd.f32 0.0, %v516
        %v518 = vpop.f32.mrb[0].mxu0
        %519 = vmatprep.mubr.f32.mxu0 0.0
        %520 = vmatmul.mubr.f32.gmra.mrb[0].mxu0 %v419
        %v521 = vpop.f32.mrb[0].mxu0
        %v522 = vadd.f32 0.0, %v521
        %v523 = vpop.f32.mrb[0].mxu0
        %524 = vmatprep.mubr.f32.mxu0 0.0
        %525 = vmatmul.mubr.f32.gmra.mrb[0].mxu0 %v420
        %v526 = vpop.f32.mrb[0].mxu0
        %v527 = vadd.f32 0.0, %v526
        %v528 = vpop.f32.mrb[0].mxu0
        %529 = vmatprep.mubr.f32.mxu0 0.0
        %530 = vmatmul.mubr.f32.gmra.mrb[0].mxu0 %v421
        %v531 = vpop.f32.mrb[0].mxu0
        %v532 = vadd.f32 0.0, %v531
        %v533 = vpop.f32.mrb[0].mxu0
        %534 = vmatprep.mubr.f32.mxu0 0.0
        %535 = vmatmul.mubr.f32.gmra.mrb[0].mxu0 %v422
        %v536 = vpop.f32.mrb[0].mxu0
        %v537 = vadd.f32 0.0, %v536
        %v538 = vpop.f32.mrb[0].mxu0
        %539 = vmatprep.mubr.f32.mxu0 0.0
        %540 = vmatmul.mubr.f32.gmra.mrb[0].mxu0 %v423
        %v541 = vpop.f32.mrb[0].mxu0
        %v542 = vadd.f32 0.0, %v541
        %v543 = vpop.f32.mrb[0].mxu0
        %544 = vmatprep.mubr.f32.mxu0 0.0
        %545 = vmatmul.mubr.f32.gmra.mrb[0].mxu0 %v424
        %v546 = vpop.f32.mrb[0].mxu0
        %v547 = vadd.f32 0.0, %v546
        %v548 = vpop.f32.mrb[0].mxu0
        %549 = vmatprep.mubr.f32.mxu0 0.0
        %550 = vmatmul.mubr.f32.gmra.mrb[0].mxu0 %v425
        %v551 = vpop.f32.mrb[0].mxu0
        %v552 = vadd.f32 0.0, %v551
        %v553 = vpop.f32.mrb[0].mxu0
        %554 = vmatprep.mubr.f32.mxu0 0.0
        %555 = vmatmul.mubr.f32.gmra.mrb[0].mxu0 %v426
        %v556 = vpop.f32.mrb[0].mxu0
        %v557 = vadd.f32 0.0, %v556
        %v558 = vpop.f32.mrb[0].mxu0
        %559 = vmatprep.mubr.f32.mxu0 0.0
        %560 = vmatmul.mubr.f32.gmra.mrb[0].mxu0 %v427
        %v561 = vpop.f32.mrb[0].mxu0
        %v562 = vadd.f32 0.0, %v561
        %v563 = vpop.f32.mrb[0].mxu0
        %564 = vmatprep.mubr.f32.mxu0 0.0
        %565 = vmatmul.mubr.f32.gmra.mrb[0].mxu0 %v428
        %v566 = vpop.f32.mrb[0].mxu0
        %v567 = vadd.f32 0.0, %v566
        %v568 = vpop.f32.mrb[0].mxu0
        %569 = vmatprep.mubr.f32.mxu0 0.0
        %570 = vmatmul.mubr.f32.gmra.mrb[0].mxu0 %v429
        %v571 = vpop.f32.mrb[0].mxu0
        %v572 = vadd.f32 0.0, %v571
        %v573 = vpop.f32.mrb[0].mxu0
        %574 = vdwg.mxu0
        %v575 = vmax.f32 %v497, 0.0
        %v576 = vmax.f32 %v502, 0.0
        %v577 = vmax.f32 %v507, 0.0
        %v578 = vmax.f32 %v512, 0.0
        %v579 = vmax.f32 %v517, 0.0
        %v580 = vmax.f32 %v522, 0.0
        %v581 = vmax.f32 %v527, 0.0
        %v582 = vmax.f32 %v532, 0.0
        %v583 = vmax.f32 %v537, 0.0
        %v584 = vmax.f32 %v542, 0.0
        %v585 = vmax.f32 %v547, 0.0
        %v586 = vmax.f32 %v552, 0.0
        %v587 = vmax.f32 %v557, 0.0
        %v588 = vmax.f32 %v562, 0.0
        %v589 = vmax.f32 %v567, 0.0
        %v590 = vmax.f32 %v572, 0.0
        %vm591 = vcmask 523264
        %592 = vst.msk [vmem:[%s190] sm:$0xff] %vm591, %v575
        %593 = vst.msk [vmem:[%s190 + $0x8] sm:$0xff] %vm591, %v576
        %594 = vst.msk [vmem:[%s190 + $0x10] sm:$0xff] %vm591, %v577
        %595 = vst.msk [vmem:[%s190 + $0x18] sm:$0xff] %vm591, %v578
        %596 = vst.msk [vmem:[%s190 + $0x20] sm:$0xff] %vm591, %v579
        %597 = vst.msk [vmem:[%s190 + $0x28] sm:$0xff] %vm591, %v580
        %598 = vst.msk [vmem:[%s190 + $0x30] sm:$0xff] %vm591, %v581
        %599 = vst.msk [vmem:[%s190 + $0x38] sm:$0xff] %vm591, %v582
        %600 = vst.msk [vmem:[%s190 + $0x40] sm:$0xff] %vm591, %v583
        %601 = vst.msk [vmem:[%s190 + $0x48] sm:$0xff] %vm591, %v584
        %602 = vst.msk [vmem:[%s190 + $0x50] sm:$0xff] %vm591, %v585
        %603 = vst.msk [vmem:[%s190 + $0x58] sm:$0xff] %vm591, %v586
        %604 = vst.msk [vmem:[%s190 + $0x60] sm:$0xff] %vm591, %v587
        %605 = vst.msk [vmem:[%s190 + $0x68] sm:$0xff] %vm591, %v588
        %606 = vst.msk [vmem:[%s190 + $0x70] sm:$0xff] %vm591, %v589
        %607 = vst.msk [vmem:[%s190 + $0x78] sm:$0xff] %vm591, %v590
        %s608 = sand.u32 %s112, 1
        %s609 = scalar_lea.sflag [#allocation3], %s608
        %s610 = sand.u32 %s112, 1
        %s611 = smul.addr %s610, 128
        %s612 = scalar_lea.vmem [#allocation2], %s611
        // Predicated region
        $region33: #{gcn_forward.1} parent=31 // pred_check
          %p613 = pneg %p122
        $region34: #{gcn_forward.1} parent=31 // pred_check_branch
          %615 = sbr.rel (%p613) target = $region36
        $region35: #{gcn_forward.1} parent=31 // pred_region
          %s617 = ssub.s32 2048, 2048
          %618 = vsyncadd %s609, %s617
          %s619 = smul.addr %s21, 16
          %s620 = sadd.s32 %s22, %s619
          %s621 = smul.addr %s620, 128
          %s622 = scalar_lea.hbm %s3, %s621
          %s623 = sshll.u32 %s612, 4
          %s624 = int_to_ptr.vmem [resolvable:$true] %s623
          %629 = dma.vmem_to_hbm [thread:$0]  %s624, 2048, %s622, %s609, 128, 128, 8
        $region36: #{gcn_forward.1} parent=31 // pred_fallthru
          _
      $region32: #{gcn_forward.1} parent=5 // pred_fallthru
        _
      %p630 = scmp.le.s32.totalorder 2, %s12
      // Predicated region
      $region37: #{gcn_forward.1} parent=5 // pred_check
        %p631 = pneg %p630
      $region38: #{gcn_forward.1} parent=5 // pred_check_branch
        %633 = sbr.rel (%p631) target = $region40
      $region39: #{gcn_forward.1} parent=5 // pred_region
        %s634 = ssub.s32 %s12, 2
        // Predicated region
        $region41: #{gcn_forward.1} parent=39 // pred_check
          %p635 = pneg %p128
        $region42: #{gcn_forward.1} parent=39 // pred_check_branch
          %637 = sbr.rel (%p635) target = $region44
        $region43: #{gcn_forward.1} parent=39 // pred_region
          %s638 = sand.u32 %s113, 1
          %s639 = scalar_lea.sflag [#allocation3], %s638
          %s640 = sand.u32 %s113, 1
          %s641 = smul.addr %s640, 128
          %s642 = scalar_lea.vmem [#allocation2], %s641
          %643 = dma.done %s639, 2048
        $region44: #{gcn_forward.1} parent=39 // pred_fallthru
          _
      $region40: #{gcn_forward.1} parent=5 // pred_fallthru
        _
    $region6: #{gcn_forward.1} parent=1 // loop_footer
      %s16 = sadd.s32 1, %s12
    $region7: #{gcn_forward.1} parent=1 // loop_footer_branch
      %11 = sbr.rel target = $region3
    $region8: #{gcn_forward.1} parent=1 // loop_exit
      _
    %644 = vsyncpa [#allocation3], 1
    %s645 = scalar_lea.sflag [#allocation3], 1
    %646 = vsyncpa %s645, 1

</llo_original>
